<compile_context>
chip_gen: v6e
topology: v6e:2x2x1
jax: 0.10.0
libtpu: 0.0.40
codegen_flags: <defaults>
</compile_context>

<pallas_src>
import functools

import jax
import jax.numpy as jnp
from jax.experimental import pallas as pl
from jax.experimental.pallas import tpu as pltpu


def _round_up(a, b):
    return (a + b - 1) // b * b


def _lorentz_agg_kernel(adj_ref, x_ref, o_ref, acc_ref, *, c_sqrt, eps):
    """One (row-tile, K-tile) step of the Lorentz centroid aggregation.

    adj_ref: [tm, tk]     tile of the dense aggregation weights
    x_ref:   [tk, F_pad]  K-slice of the (lane-padded) feature matrix
    o_ref:   [tm, F_pad]  output tile (written on the last K step)
    acc_ref: [tm, F_pad]  f32 VMEM accumulator, resident across the K axis
    """
    k = pl.program_id(1)

    @pl.when(k == 0)
    def _():
        acc_ref[...] = jnp.zeros_like(acc_ref)

    # Dense aggregation (the spmm hot path) on the MXU, f32 accumulation.
    acc_ref[...] += jnp.dot(
        adj_ref[...], x_ref[...], preferred_element_type=jnp.float32
    )

    @pl.when(k == pl.num_programs(1) - 1)
    def _():
        sum_x = acc_ref[...]
        # Lorentz inner product along the feature axis:
        #   -x0^2 + sum_{i>=1} xi^2 == sum_all(xi^2) - 2*x0^2
        # (zero-padded feature lanes contribute exactly 0).
        sq = sum_x * sum_x
        inner = jnp.sum(sq, axis=-1, keepdims=True) - 2.0 * sq[:, 0:1]
        # rsqrt goes to the EUP slot; eps clamp guards light-cone / padded rows.
        coeff = c_sqrt * jax.lax.rsqrt(jnp.maximum(jnp.abs(inner), eps))
        o_ref[...] = (coeff * sum_x).astype(o_ref.dtype)


def lorentz_agg(adj, x, c, *, tm=256, tk=512,
                compute_dtype=jnp.bfloat16, eps=1e-30):
    """Pallas implementation of LorentzAgg.lorentz_centroid (use_att=False).

    adj: [N, N] dense aggregation matrix
    x:   [N, F] node features (column 0 is the Lorentz 'time' coordinate)
    c:   python float curvature
    """
    N, F = x.shape
    assert adj.shape == (N, N)

    out_dtype = x.dtype
    c_sqrt = float(c) ** 0.5

    # Lane-dense feature dim (multiple of 128) -> unmasked vector stores.
    f_pad = _round_up(max(F, 128), 128)

    # Row tile: multiple of 8 (sublane). K tile: multiple of 128 (lane).
    tm = max(8, min(_round_up(tm, 8), _round_up(N, 8)))
    tk = max(128, min(_round_up(tk, 128), _round_up(N, 128)))

    rows_pad = _round_up(N, tm)
    k_pad = _round_up(N, tk)

    # Pad and (optionally) down-cast the streamed operands.  The MXU still
    # accumulates in f32 via preferred_element_type.
    adj_p = (
        jnp.zeros((rows_pad, k_pad), compute_dtype)
        .at[:N, :N].set(adj.astype(compute_dtype))
    )
    x_p = (
        jnp.zeros((k_pad, f_pad), compute_dtype)
        .at[:N, :F].set(x.astype(compute_dtype))
    )

    # VMEM budget: double-buffered adj/x/out tiles + the f32 accumulator.
    in_bytes = jnp.dtype(compute_dtype).itemsize
    out_bytes = jnp.dtype(out_dtype).itemsize
    vmem_est = (
        2 * tm * tk * in_bytes        # adj tiles (double-buffered)
        + 2 * tk * f_pad * in_bytes   # x tiles (double-buffered)
        + 2 * tm * f_pad * out_bytes  # output tiles
        + tm * f_pad * 4              # accumulator
    )
    vmem_limit = int(min(max(4 * vmem_est, 32 * 1024 * 1024), 48 * 1024 * 1024))

    kernel = functools.partial(_lorentz_agg_kernel, c_sqrt=c_sqrt, eps=float(eps))

    out_p = pl.pallas_call(
        kernel,
        out_shape=jax.ShapeDtypeStruct((rows_pad, f_pad), out_dtype),
        grid_spec=pltpu.PrefetchScalarGridSpec(
            num_scalar_prefetch=0,
            grid=(rows_pad // tm, k_pad // tk),      # K (reduction) axis last
            in_specs=[
                pl.BlockSpec((tm, tk), lambda i, k: (i, k)),      # adj tile
                pl.BlockSpec((tk, f_pad), lambda i, k: (k, 0)),   # x K-slice
            ],
            out_specs=pl.BlockSpec((tm, f_pad), lambda i, k: (i, 0)),
            scratch_shapes=[pltpu.VMEM((tm, f_pad), jnp.float32)],
        ),
        compiler_params=pltpu.CompilerParams(
            dimension_semantics=("parallel", "arbitrary"),
            vmem_limit_bytes=vmem_limit,
        ),
    )(adj_p, x_p)

    return out_p[:N, :F]


def lorentz_agg_reference(adj, x, c):
    """Pure-JAX reference mirroring the PyTorch module."""
    sum_x = jnp.matmul(adj, x, precision=jax.lax.Precision.HIGHEST)
    x_inner = -sum_x[:, 0] * sum_x[:, 0] + jnp.sum(
        sum_x[:, 1:] * sum_x[:, 1:], axis=-1
    )
    coeff = (c ** 0.5) / jnp.sqrt(jnp.abs(x_inner))
    return coeff[:, None] * sum_x


if __name__ == "__main__":
    key = jax.random.PRNGKey(0)
    k_adj, k_x = jax.random.split(key)

    num_nodes = 320       # small, but exercises row/K tiling AND padding
    in_features = 32
    c = 1.0

    # Deterministic synthetic inputs: a row-normalized random "adjacency"
    # (dense, as torch.spmm would densify the aggregation result anyway)
    # and random node features.
    adj_raw = jax.random.uniform(k_adj, (num_nodes, num_nodes), dtype=jnp.float32)
    adj = adj_raw / jnp.sum(adj_raw, axis=-1, keepdims=True)
    x = jax.random.normal(k_x, (num_nodes, in_features), dtype=jnp.float32)

    ref = lorentz_agg_reference(adj, x, c)

    # 1) Exact-precision path (f32 streamed operands): validates kernel math,
    #    K-accumulation and the padded-tile plumbing.
    out_f32 = lorentz_agg(adj, x, c, tm=128, tk=128, compute_dtype=jnp.float32)
    out_f32 = jax.block_until_ready(out_f32)
    assert out_f32.shape == (num_nodes, in_features)
    assert jnp.allclose(out_f32, ref, rtol=1e-4, atol=1e-5), "f32 mismatch vs reference"

    # 2) Default bandwidth-optimized path (bf16 streamed adj/x, f32 MXU accum).
    out_bf16 = lorentz_agg(adj, x, c, tm=128, tk=128)
    out_bf16 = jax.block_until_ready(out_bf16)
    assert out_bf16.shape == (num_nodes, in_features)
    assert jnp.allclose(out_bf16, ref, rtol=5e-2, atol=5e-3), "bf16 mismatch vs reference"

    print("KERNEL_OK")
</pallas_src>

<mosaic_0001>
module attributes {stable_mosaic.version = 11 : i64} {
  func.func @_lorentz_agg_kernel(%arg0: i32, %arg1: i32, %arg2: memref<128x128xf32, #tpu.memory_space<vmem>>, %arg3: memref<128x128xf32, #tpu.memory_space<vmem>>, %arg4: memref<128x128xf32, #tpu.memory_space<vmem>>, %arg5: memref<128x128xf32, #tpu.memory_space<vmem>>) attributes {dimension_semantics = [#tpu.dimension_semantics<parallel>, #tpu.dimension_semantics<arbitrary>], iteration_bounds = array<i64: 3, 3>, scalar_prefetch = 0 : i64, scratch_operands = 1 : i64, tpu.core_type = #tpu.core_type<tc>, window_params = [{transform_indices = @transform_0, window_bounds = array<i64: 128, 128>}, {transform_indices = @transform_1, window_bounds = array<i64: 128, 128>}, {transform_indices = @transform_2, window_bounds = array<i64: 128, 128>}]} {
    %c0_i32 = arith.constant 0 : i32
    %0 = arith.cmpi eq, %arg1, %c0_i32 : i32
    %1 = arith.extui %0 : i1 to i32
    %c0_i32_0 = arith.constant 0 : i32
    %2 = arith.cmpi ne, %1, %c0_i32_0 : i32
    scf.if %2 {
      %cst_9 = arith.constant 0.000000e+00 : f32
      %12 = vector.broadcast %cst_9 : f32 to vector<128x128xf32>
      %c0_10 = arith.constant 0 : index
      %c0_11 = arith.constant 0 : index
      %13 = vector.load %arg5[%c0_10, %c0_11] : memref<128x128xf32, #tpu.memory_space<vmem>>, vector<128x128xf32>
      tpu.vector_store %arg5[%c0_10, %c0_11], %12 {strides = array<i32>} : memref<128x128xf32, #tpu.memory_space<vmem>>, vector<128x128xf32>,
    } else {
    }
    %c0 = arith.constant 0 : index
    %c0_1 = arith.constant 0 : index
    %3 = vector.load %arg5[%c0, %c0_1] : memref<128x128xf32, #tpu.memory_space<vmem>>, vector<128x128xf32>
    %c0_2 = arith.constant 0 : index
    %c0_3 = arith.constant 0 : index
    %4 = vector.load %arg2[%c0_2, %c0_3] : memref<128x128xf32, #tpu.memory_space<vmem>>, vector<128x128xf32>
    %c0_4 = arith.constant 0 : index
    %c0_5 = arith.constant 0 : index
    %5 = vector.load %arg3[%c0_4, %c0_5] : memref<128x128xf32, #tpu.memory_space<vmem>>, vector<128x128xf32>
    %cst = arith.constant dense<0.000000e+00> : vector<128x128xf32>
    %6 = tpu.matmul %4, %5, %cst {dimension_numbers = #tpu.dot_dimension_numbers<[1], [0], [0], [1], [0, 0, 1, 1], [], []>} : vector<128x128xf32>, vector<128x128xf32>, vector<128x128xf32> -> vector<128x128xf32>
    %7 = arith.addf %3, %6 : vector<128x128xf32>
    %c0_6 = arith.constant 0 : index
    %c0_7 = arith.constant 0 : index
    %8 = vector.load %arg5[%c0_6, %c0_7] : memref<128x128xf32, #tpu.memory_space<vmem>>, vector<128x128xf32>
    tpu.vector_store %arg5[%c0_6, %c0_7], %7 {strides = array<i32>} : memref<128x128xf32, #tpu.memory_space<vmem>>, vector<128x128xf32>,
    %c2_i32 = arith.constant 2 : i32
    %9 = arith.cmpi eq, %arg1, %c2_i32 : i32
    %10 = arith.extui %9 : i1 to i32
    %c0_i32_8 = arith.constant 0 : i32
    %11 = arith.cmpi ne, %10, %c0_i32_8 : i32
    scf.if %11 {
      %c0_9 = arith.constant 0 : index
      %c0_10 = arith.constant 0 : index
      %12 = vector.load %arg5[%c0_9, %c0_10] : memref<128x128xf32, #tpu.memory_space<vmem>>, vector<128x128xf32>
      %13 = arith.mulf %12, %12 : vector<128x128xf32>
      %cst_11 = arith.constant dense<0.000000e+00> : vector<128xf32>
      %14 = vector.multi_reduction <add>, %13, %cst_11 [1] : vector<128x128xf32> to vector<128xf32>
      %15 = vector.shape_cast %14 : vector<128xf32> to vector<128x1xf32>
      %16 = vector.extract_strided_slice %13 {offsets = [0, 0], sizes = [128, 1], strides = [1, 1]} : vector<128x128xf32> to vector<128x1xf32>
      %cst_12 = arith.constant 2.000000e+00 : f32
      %17 = vector.broadcast %cst_12 : f32 to vector<128x1xf32>
      %18 = arith.mulf %17, %16 : vector<128x1xf32>
      %19 = arith.subf %15, %18 : vector<128x1xf32>
      %20 = math.absf %19 : vector<128x1xf32>
      %cst_13 = arith.constant 1.000000e-30 : f32
      %21 = vector.broadcast %cst_13 : f32 to vector<128x1xf32>
      %22 = arith.maximumf %20, %21 : vector<128x1xf32>
      %23 = math.rsqrt %22 : vector<128x1xf32>
      %cst_14 = arith.constant 1.000000e+00 : f32
      %24 = vector.broadcast %cst_14 : f32 to vector<128x1xf32>
      %25 = arith.mulf %24, %23 : vector<128x1xf32>
      %26 = vector.broadcast %25 : vector<128x1xf32> to vector<128x128xf32>
      %27 = arith.mulf %26, %12 : vector<128x128xf32>
      %c0_15 = arith.constant 0 : index
      %c0_16 = arith.constant 0 : index
      %28 = vector.load %arg4[%c0_15, %c0_16] : memref<128x128xf32, #tpu.memory_space<vmem>>, vector<128x128xf32>
      tpu.vector_store %arg4[%c0_15, %c0_16], %27 {strides = array<i32>} : memref<128x128xf32, #tpu.memory_space<vmem>>, vector<128x128xf32>,
    } else {
    }
    return
  }
  func.func @transform_0(%arg0: i32, %arg1: i32) -> (i32, i32) {
    %c0_i32 = arith.constant 0 : i32
    return %arg0, %arg1 : i32, i32
  }
  func.func @transform_1(%arg0: i32, %arg1: i32) -> (i32, i32) {
    %c0_i32 = arith.constant 0 : i32
    %c0_i32_0 = arith.constant 0 : i32
    return %arg1, %c0_i32 : i32, i32
  }
  func.func @transform_2(%arg0: i32, %arg1: i32) -> (i32, i32) {
    %c0_i32 = arith.constant 0 : i32
    %c0_i32_0 = arith.constant 0 : i32
    return %arg0, %c0_i32 : i32, i32
  }
}

</mosaic_0001>

<llo_original>
// kernel: tpu_custom_call.1
$region0: #{tpu_custom_call.1}
  #allocation0 [shape = 'u32[]', space=smem, size = 0x4, offset = 0x4, fixed_abs, tag = 'smem constant byte address 0x4 - core index']
  #allocation1 [shape = 'u32[144,128]{1,0:T(1,128)}', space=vmem, size = 0x12000, scoped, tag = 'internal scratch']
  #allocation2 [shape = 'f32[128,128]{1,0:T(8,128)}', space=vmem, size = 0x10000, scoped, tag = 'scratch operand']
  %s0 = inlined_call_operand.hbm [shape: f32[384,384], index: 0, kind: input, shape index: {}]
  %s1 = inlined_call_operand.hbm [shape: f32[384,128], index: 1, kind: input, shape index: {}]
  %s2 = inlined_call_operand.hbm [shape: f32[384,128], index: 2, kind: output, shape index: {}]
  %s3 = sld [smem:[#allocation0]]
  $region57: #{tpu_custom_call.1} parent=0
    _
  %s5 = ssub.s32 1, %s3
  %s6 = scalar_select 0, %s5, %s3
  $region1: #{tpu_custom_call.1} parent=0
    #allocation3 [shape = 'u8[131072]{0}', space=vmem, size = 0x20000, scoped, tag = 'input window, operand 0']
    #allocation4 [shape = 's32[2]{0}', space=sflag, size = 0x8, scoped, tag = 'scoped memory for tpu_custom_call.1']
    #allocation5 [shape = 's32[2]{0}', space=sflag, size = 0x8, scoped, tag = 'scoped memory for tpu_custom_call.1']
    #allocation6 [shape = 'u8[131072]{0}', space=vmem, size = 0x20000, scoped, tag = 'input window, operand 1']
    #allocation7 [shape = 's32[2]{0}', space=sflag, size = 0x8, scoped, tag = 'scoped memory for tpu_custom_call.1']
    #allocation8 [shape = 'u8[131072]{0}', space=vmem, size = 0x20000, scoped, tag = 'output window, operand 0']
    %7 = vsyncpa [#allocation4], 0
    %s8 = scalar_lea.sflag [#allocation4], 1
    %9 = vsyncpa %s8, 0
    %10 = vsyncpa [#allocation7], 0
    %s11 = scalar_lea.sflag [#allocation7], 1
    %12 = vsyncpa %s11, 0
    %13 = vsyncpa [#allocation5], 0
    %s14 = scalar_lea.sflag [#allocation5], 1
    %15 = vsyncpa %s14, 0
    loop: start=0, step=1, limit=11
    $region2: #{tpu_custom_call.1} parent=1 // loop_pre_header
      _
    $region3: #{tpu_custom_call.1} parent=1 // loop_header
      %s17 = sphi 0, %s21
      %p18 = scmp.ge.s32.totalorder %s17, 11
      %s24 = sphi 0, %s36
      %s25 = sphi 0, %s32
      %s26 = sphi 0, %s24
      %s27 = sphi 0, %s25
      %s28 = sphi 0, %s26
      %s29 = sphi 0, %s27
      %s41 = sphi 0, %s43
      %s44 = sphi 0, %s41
      %s45 = sphi 0, %s44
      %s61 = sphi 0, %s45
      %s67 = sphi 0, %s69
      %s70 = sphi 0, %s67
      %s71 = sphi 0, %s70
      %s87 = sphi 0, %s71
      %s93 = sphi 0, %s95
      %s96 = sphi 0, %s93
      %s97 = sphi 0, %s96
      %s113 = sphi 0, %s97
    $region4: #{tpu_custom_call.1} parent=1 // loop_header_branch
      %20 = sbr.rel (%p18) target = $region8
    $region5: #{tpu_custom_call.1} parent=1 // loop_body
      %s22 = ssub.s32 %s17, 1
      %s23 = ssub.s32 %s17, 2
      %s30 = sadd.s32 1, %s25
      %p31 = scmp.ge.s32.totalorder %s30, 3
      %s32 = scalar_select %p31, 0, %s30
      %s33 = sadd.s32 1, %s24
      %s34 = scalar_select %p31, %s33, %s24
      %p35 = scmp.ge.s32.totalorder %s34, 3
      %s36 = scalar_select %p35, 0, %s34
      %s37 = ssub.s32 %s24, %s36
      %s38 = ssub.s32 %s25, %s32
      %s39 = sor.u32 %s37, %s38
      %p40 = scmp.eq.s32.totalorder %s39, 0
      %s42 = sadd.s32 %s41, 1
      %s43 = scalar_select %p40, %s41, %s42
      %p46 = pneg %p40
      %p47 = scmp.eq.s32.totalorder %s17, 8
      %p48 = por %p46, %p47
      %p49 = scmp.ne.s32.totalorder %s41, %s44
      %p50 = scmp.eq.s32.totalorder %s17, 0
      %p51 = por %p49, %p50
      %p52 = scmp.ne.s32.totalorder %s41, %s44
      %p53 = scmp.eq.s32.totalorder %s22, 8
      %p54 = por %p52, %p53
      %p55 = scmp.ne.s32.totalorder %s44, %s45
      %p56 = scmp.eq.s32.totalorder %s22, 0
      %p57 = por %p55, %p56
      %p58 = scmp.ne.s32.totalorder %s44, %s45
      %p59 = scmp.eq.s32.totalorder %s23, 8
      %p60 = por %p58, %p59
      %p62 = scmp.ne.s32.totalorder %s45, %s61
      %p63 = scmp.eq.s32.totalorder %s23, 0
      %p64 = por %p62, %p63
      %s65 = ssub.s32 %s25, %s32
      %p66 = scmp.eq.s32.totalorder %s65, 0
      %s68 = sadd.s32 %s67, 1
      %s69 = scalar_select %p66, %s67, %s68
      %p72 = pneg %p66
      %p73 = scmp.eq.s32.totalorder %s17, 8
      %p74 = por %p72, %p73
      %p75 = scmp.ne.s32.totalorder %s67, %s70
      %p76 = scmp.eq.s32.totalorder %s17, 0
      %p77 = por %p75, %p76
      %p78 = scmp.ne.s32.totalorder %s67, %s70
      %p79 = scmp.eq.s32.totalorder %s22, 8
      %p80 = por %p78, %p79
      %p81 = scmp.ne.s32.totalorder %s70, %s71
      %p82 = scmp.eq.s32.totalorder %s22, 0
      %p83 = por %p81, %p82
      %p84 = scmp.ne.s32.totalorder %s70, %s71
      %p85 = scmp.eq.s32.totalorder %s23, 8
      %p86 = por %p84, %p85
      %p88 = scmp.ne.s32.totalorder %s71, %s87
      %p89 = scmp.eq.s32.totalorder %s23, 0
      %p90 = por %p88, %p89
      %s91 = ssub.s32 %s24, %s36
      %p92 = scmp.eq.s32.totalorder %s91, 0
      %s94 = sadd.s32 %s93, 1
      %s95 = scalar_select %p92, %s93, %s94
      %p98 = pneg %p92
      %p99 = scmp.eq.s32.totalorder %s17, 8
      %p100 = por %p98, %p99
      %p101 = scmp.ne.s32.totalorder %s93, %s96
      %p102 = scmp.eq.s32.totalorder %s17, 0
      %p103 = por %p101, %p102
      %p104 = scmp.ne.s32.totalorder %s93, %s96
      %p105 = scmp.eq.s32.totalorder %s22, 8
      %p106 = por %p104, %p105
      %p107 = scmp.ne.s32.totalorder %s96, %s97
      %p108 = scmp.eq.s32.totalorder %s22, 0
      %p109 = por %p107, %p108
      %p110 = scmp.ne.s32.totalorder %s96, %s97
      %p111 = scmp.eq.s32.totalorder %s23, 8
      %p112 = por %p110, %p111
      %p114 = scmp.ne.s32.totalorder %s97, %s113
      %p115 = scmp.eq.s32.totalorder %s23, 0
      %p116 = por %p114, %p115
      %p117 = scmp.le.s32.totalorder 1, %s17
      %p118 = scmp.lt.s32.totalorder %s17, 10
      %p119 = pnand %p117, %p118
      %p120 = pneg %p119
      // Predicated region
      $region9: #{tpu_custom_call.1} parent=5 // pred_check
        _
      $region10: #{tpu_custom_call.1} parent=5 // pred_check_branch
        %122 = sbr.rel (%p119) target = $region12
      $region11: #{tpu_custom_call.1} parent=5 // pred_region
        %s123 = ssub.s32 %s17, 1
      $region12: #{tpu_custom_call.1} parent=5 // pred_fallthru
        _
      %p124 = scmp.lt.s32.totalorder %s17, 9
      // Predicated region
      $region13: #{tpu_custom_call.1} parent=5 // pred_check
        %p125 = pneg %p124
      $region14: #{tpu_custom_call.1} parent=5 // pred_check_branch
        %127 = sbr.rel (%p125) target = $region16
      $region15: #{tpu_custom_call.1} parent=5 // pred_region
        // Predicated region
        $region17: #{tpu_custom_call.1} parent=15 // pred_check
          %p128 = pneg %p51
        $region18: #{tpu_custom_call.1} parent=15 // pred_check_branch
          %130 = sbr.rel (%p128) target = $region20
        $region19: #{tpu_custom_call.1} parent=15 // pred_region
          %s131 = sand.u32 %s41, 1
          %s132 = scalar_lea.sflag [#allocation4], %s131
          %s133 = sand.u32 %s41, 1
          %s134 = smul.addr %s133, 128
          %s135 = scalar_lea.vmem [#allocation3], %s134
          %s136 = smul.u32 16, %s24
          %s138 = ssub.s32 2048, 2048
          %139 = vsyncadd %s132, %s138
          %s140 = smul.addr %s136, 3
          %s141 = sadd.s32 %s25, %s140
          %s142 = smul.addr %s141, 128
          %s143 = scalar_lea.hbm %s0, %s142
          %s144 = sshll.u32 %s135, 4
          %s145 = int_to_ptr.vmem [resolvable:$true] %s144
          %150 = dma.hbm_to_vmem [thread:$0]  %s143, 2048, %s145, %s132, 384, 128, 8
        $region20: #{tpu_custom_call.1} parent=15 // pred_fallthru
          _
        // Predicated region
        $region21: #{tpu_custom_call.1} parent=15 // pred_check
          %p151 = pneg %p77
        $region22: #{tpu_custom_call.1} parent=15 // pred_check_branch
          %153 = sbr.rel (%p151) target = $region24
        $region23: #{tpu_custom_call.1} parent=15 // pred_region
          %s154 = sand.u32 %s67, 1
          %s155 = scalar_lea.sflag [#allocation7], %s154
          %s156 = sand.u32 %s67, 1
          %s157 = smul.addr %s156, 128
          %s158 = scalar_lea.vmem [#allocation6], %s157
          %s159 = smul.u32 16, %s25
          %s161 = ssub.s32 2048, 2048
          %162 = vsyncadd %s155, %s161
          %s163 = smul.addr %s159, 128
          %s164 = scalar_lea.hbm %s1, %s163
          %s165 = sshll.u32 %s158, 4
          %s166 = int_to_ptr.vmem [resolvable:$true] %s165
          %171 = dma.hbm_to_vmem [thread:$0]  %s164, 2048, %s166, %s155, 128, 128, 8
        $region24: #{tpu_custom_call.1} parent=15 // pred_fallthru
          _
      $region16: #{tpu_custom_call.1} parent=5 // pred_fallthru
        _
      %p172 = scmp.le.s32.totalorder 1, %s17
      %p173 = scmp.lt.s32.totalorder %s17, 10
      %p174 = pnand %p172, %p173
      %p175 = pneg %p174
      // Predicated region
      $region25: #{tpu_custom_call.1} parent=5 // pred_check
        _
      $region26: #{tpu_custom_call.1} parent=5 // pred_check_branch
        %177 = sbr.rel (%p174) target = $region28
      $region27: #{tpu_custom_call.1} parent=5 // pred_region
        %s178 = ssub.s32 %s17, 1
        %s179 = sand.u32 %s44, 1
        %s180 = scalar_lea.sflag [#allocation4], %s179
        %s181 = sand.u32 %s44, 1
        %s182 = smul.addr %s181, 128
        %s183 = scalar_lea.vmem [#allocation3], %s182
        // Predicated region
        $region29: #{tpu_custom_call.1} parent=27 // pred_check
          %p184 = pneg %p57
        $region30: #{tpu_custom_call.1} parent=27 // pred_check_branch
          %186 = sbr.rel (%p184) target = $region32
        $region31: #{tpu_custom_call.1} parent=27 // pred_region
          %187 = dma.done %s180, 2048
        $region32: #{tpu_custom_call.1} parent=27 // pred_fallthru
          _
        %s188 = sand.u32 %s70, 1
        %s189 = scalar_lea.sflag [#allocation7], %s188
        %s190 = sand.u32 %s70, 1
        %s191 = smul.addr %s190, 128
        %s192 = scalar_lea.vmem [#allocation6], %s191
        // Predicated region
        $region33: #{tpu_custom_call.1} parent=27 // pred_check
          %p193 = pneg %p83
        $region34: #{tpu_custom_call.1} parent=27 // pred_check_branch
          %195 = sbr.rel (%p193) target = $region36
        $region35: #{tpu_custom_call.1} parent=27 // pred_region
          %196 = dma.done %s189, 2048
        $region36: #{tpu_custom_call.1} parent=27 // pred_fallthru
          _
        %s197 = sand.u32 %s44, 1
        %s198 = scalar_lea.sflag [#allocation4], %s197
        %s199 = sand.u32 %s44, 1
        %s200 = smul.addr %s199, 128
        %s201 = scalar_lea.vmem [#allocation3], %s200
        %p202 = pneg %p57
        %p203 = pneg %p54
        %s204 = sand.u32 %s70, 1
        %s205 = scalar_lea.sflag [#allocation7], %s204
        %s206 = sand.u32 %s70, 1
        %s207 = smul.addr %s206, 128
        %s208 = scalar_lea.vmem [#allocation6], %s207
        %p209 = pneg %p83
        %p210 = pneg %p80
        %p211 = pneg %p109
        %p212 = pneg %p106
        %s213 = sand.u32 %s96, 1
        %s214 = scalar_lea.sflag [#allocation5], %s213
        %s215 = sand.u32 %s96, 1
        %s216 = smul.addr %s215, 128
        %s217 = scalar_lea.vmem [#allocation8], %s216
        %s218 = smul.u32 16, %s26
        %s219 = smul.u32 16, %s27
        %s220 = smul.u32 16, %s26
        %p221 = scmp.eq.s32.totalorder %s27, 0
        // Predicated region
        $region37: #{tpu_custom_call.1} parent=27 // pred_check
          %p222 = pneg %p221
        $region38: #{tpu_custom_call.1} parent=27 // pred_check_branch
          %224 = sbr.rel (%p222) target = $region40
        $region39: #{tpu_custom_call.1} parent=27 // pred_region
          %225 = vst [vmem:[#allocation2] sm:$0xff] 0.0
          %226 = vst [vmem:[#allocation2 + $0x8] sm:$0xff] 0.0
          %227 = vst [vmem:[#allocation2 + $0x10] sm:$0xff] 0.0
          %228 = vst [vmem:[#allocation2 + $0x18] sm:$0xff] 0.0
          %229 = vst [vmem:[#allocation2 + $0x20] sm:$0xff] 0.0
          %230 = vst [vmem:[#allocation2 + $0x28] sm:$0xff] 0.0
          %231 = vst [vmem:[#allocation2 + $0x30] sm:$0xff] 0.0
          %232 = vst [vmem:[#allocation2 + $0x38] sm:$0xff] 0.0
          %233 = vst [vmem:[#allocation2 + $0x40] sm:$0xff] 0.0
          %234 = vst [vmem:[#allocation2 + $0x48] sm:$0xff] 0.0
          %235 = vst [vmem:[#allocation2 + $0x50] sm:$0xff] 0.0
          %236 = vst [vmem:[#allocation2 + $0x58] sm:$0xff] 0.0
          %237 = vst [vmem:[#allocation2 + $0x60] sm:$0xff] 0.0
          %238 = vst [vmem:[#allocation2 + $0x68] sm:$0xff] 0.0
          %239 = vst [vmem:[#allocation2 + $0x70] sm:$0xff] 0.0
          %240 = vst [vmem:[#allocation2 + $0x78] sm:$0xff] 0.0
        $region40: #{tpu_custom_call.1} parent=27 // pred_fallthru
          _
        %v241 = vld [vmem:[#allocation2] sm:$0xff]
        %v242 = vld [vmem:[#allocation2 + $0x8] sm:$0xff]
        %v243 = vld [vmem:[#allocation2 + $0x10] sm:$0xff]
        %v244 = vld [vmem:[#allocation2 + $0x18] sm:$0xff]
        %v245 = vld [vmem:[#allocation2 + $0x20] sm:$0xff]
        %v246 = vld [vmem:[#allocation2 + $0x28] sm:$0xff]
        %v247 = vld [vmem:[#allocation2 + $0x30] sm:$0xff]
        %v248 = vld [vmem:[#allocation2 + $0x38] sm:$0xff]
        %v249 = vld [vmem:[#allocation2 + $0x40] sm:$0xff]
        %v250 = vld [vmem:[#allocation2 + $0x48] sm:$0xff]
        %v251 = vld [vmem:[#allocation2 + $0x50] sm:$0xff]
        %v252 = vld [vmem:[#allocation2 + $0x58] sm:$0xff]
        %v253 = vld [vmem:[#allocation2 + $0x60] sm:$0xff]
        %v254 = vld [vmem:[#allocation2 + $0x68] sm:$0xff]
        %v255 = vld [vmem:[#allocation2 + $0x70] sm:$0xff]
        %v256 = vld [vmem:[#allocation2 + $0x78] sm:$0xff]
        %v257 = vld [vmem:[%s183] sm:$0xff]
        %v258 = vld [vmem:[%s183 + $0x8] sm:$0xff]
        %v259 = vld [vmem:[%s183 + $0x10] sm:$0xff]
        %v260 = vld [vmem:[%s183 + $0x18] sm:$0xff]
        %v261 = vld [vmem:[%s183 + $0x20] sm:$0xff]
        %v262 = vld [vmem:[%s183 + $0x28] sm:$0xff]
        %v263 = vld [vmem:[%s183 + $0x30] sm:$0xff]
        %v264 = vld [vmem:[%s183 + $0x38] sm:$0xff]
        %v265 = vld [vmem:[%s183 + $0x40] sm:$0xff]
        %v266 = vld [vmem:[%s183 + $0x48] sm:$0xff]
        %v267 = vld [vmem:[%s183 + $0x50] sm:$0xff]
        %v268 = vld [vmem:[%s183 + $0x58] sm:$0xff]
        %v269 = vld [vmem:[%s183 + $0x60] sm:$0xff]
        %v270 = vld [vmem:[%s183 + $0x68] sm:$0xff]
        %v271 = vld [vmem:[%s183 + $0x70] sm:$0xff]
        %v272 = vld [vmem:[%s183 + $0x78] sm:$0xff]
        %v273 = vld [vmem:[%s192] sm:$0xff]
        %v274 = vld [vmem:[%s192 + $0x8] sm:$0xff]
        %v275 = vld [vmem:[%s192 + $0x10] sm:$0xff]
        %v276 = vld [vmem:[%s192 + $0x18] sm:$0xff]
        %v277 = vld [vmem:[%s192 + $0x20] sm:$0xff]
        %v278 = vld [vmem:[%s192 + $0x28] sm:$0xff]
        %v279 = vld [vmem:[%s192 + $0x30] sm:$0xff]
        %v280 = vld [vmem:[%s192 + $0x38] sm:$0xff]
        %v281 = vld [vmem:[%s192 + $0x40] sm:$0xff]
        %v282 = vld [vmem:[%s192 + $0x48] sm:$0xff]
        %v283 = vld [vmem:[%s192 + $0x50] sm:$0xff]
        %v284 = vld [vmem:[%s192 + $0x58] sm:$0xff]
        %v285 = vld [vmem:[%s192 + $0x60] sm:$0xff]
        %v286 = vld [vmem:[%s192 + $0x68] sm:$0xff]
        %v287 = vld [vmem:[%s192 + $0x70] sm:$0xff]
        %v288 = vld [vmem:[%s192 + $0x78] sm:$0xff]
        %289 = vmatprep.subr.mxu0 0.0
        %290 = vmatpush1.msra.mxu0 %v288
        %291 = vmatprep.subr.mxu0 0.0
        %292 = vmatpush1.msra.mxu0 %v287
        %293 = vmatprep.subr.mxu0 0.0
        %294 = vmatpush1.msra.mxu0 %v286
        %295 = vmatprep.subr.mxu0 0.0
        %296 = vmatpush1.msra.mxu0 %v285
        %297 = vmatprep.subr.mxu0 0.0
        %298 = vmatpush1.msra.mxu0 %v284
        %299 = vmatprep.subr.mxu0 0.0
        %300 = vmatpush1.msra.mxu0 %v283
        %301 = vmatprep.subr.mxu0 0.0
        %302 = vmatpush1.msra.mxu0 %v282
        %303 = vmatprep.subr.mxu0 0.0
        %304 = vmatpush1.msra.mxu0 %v281
        %305 = vmatprep.subr.mxu0 0.0
        %306 = vmatpush1.msra.mxu0 %v280
        %307 = vmatprep.subr.mxu0 0.0
        %308 = vmatpush1.msra.mxu0 %v279
        %309 = vmatprep.subr.mxu0 0.0
        %310 = vmatpush1.msra.mxu0 %v278
        %311 = vmatprep.subr.mxu0 0.0
        %312 = vmatpush1.msra.mxu0 %v277
        %313 = vmatprep.subr.mxu0 0.0
        %314 = vmatpush1.msra.mxu0 %v276
        %315 = vmatprep.subr.mxu0 0.0
        %316 = vmatpush1.msra.mxu0 %v275
        %317 = vmatprep.subr.mxu0 0.0
        %318 = vmatpush1.msra.mxu0 %v274
        %319 = vmatprep.subr.mxu0 0.0
        %320 = vmatpush1.msra.mxu0 %v273
        %321 = vmatprep.subr.mxu0 0.0
        %322 = vmatpush2.msra.mxu0 0.0
        %323 = vmatprep.subr.mxu0 0.0
        %324 = vmatpush2.msra.mxu0 0.0
        %325 = vmatprep.subr.mxu0 0.0
        %326 = vmatpush2.msra.mxu0 0.0
        %327 = vmatprep.subr.mxu0 0.0
        %328 = vmatpush2.msra.mxu0 0.0
        %329 = vmatprep.subr.mxu0 0.0
        %330 = vmatpush2.msra.mxu0 0.0
        %331 = vmatprep.subr.mxu0 0.0
        %332 = vmatpush2.msra.mxu0 0.0
        %333 = vmatprep.subr.mxu0 0.0
        %334 = vmatpush2.msra.mxu0 0.0
        %335 = vmatprep.subr.mxu0 0.0
        %336 = vmatpush2.msra.mxu0 0.0
        %337 = vmatprep.subr.mxu0 0.0
        %338 = vmatpush2.msra.mxu0 0.0
        %339 = vmatprep.subr.mxu0 0.0
        %340 = vmatpush2.msra.mxu0 0.0
        %341 = vmatprep.subr.mxu0 0.0
        %342 = vmatpush2.msra.mxu0 0.0
        %343 = vmatprep.subr.mxu0 0.0
        %344 = vmatpush2.msra.mxu0 0.0
        %345 = vmatprep.subr.mxu0 0.0
        %346 = vmatpush2.msra.mxu0 0.0
        %347 = vmatprep.subr.mxu0 0.0
        %348 = vmatpush2.msra.mxu0 0.0
        %349 = vmatprep.subr.mxu0 0.0
        %350 = vmatpush2.msra.mxu0 0.0
        %351 = vmatprep.subr.mxu0 0.0
        %352 = vmatpush2.msra.mxu0 0.0
        %353 = vmatprep.mubr.f32.mxu0 0.0
        %354 = vmatmul.mubr.f32.gmra.mxu0 %v257
        %v355 = vpop.f32.mrf.mxu0
        %v356 = vadd.f32 0.0, %v355
        %v357 = vpop.f32.mrf.mxu0
        %358 = vmatprep.mubr.f32.mxu0 0.0
        %359 = vmatmul.mubr.f32.gmra.mxu0 %v258
        %v360 = vpop.f32.mrf.mxu0
        %v361 = vadd.f32 0.0, %v360
        %v362 = vpop.f32.mrf.mxu0
        %363 = vmatprep.mubr.f32.mxu0 0.0
        %364 = vmatmul.mubr.f32.gmra.mxu0 %v259
        %v365 = vpop.f32.mrf.mxu0
        %v366 = vadd.f32 0.0, %v365
        %v367 = vpop.f32.mrf.mxu0
        %368 = vmatprep.mubr.f32.mxu0 0.0
        %369 = vmatmul.mubr.f32.gmra.mxu0 %v260
        %v370 = vpop.f32.mrf.mxu0
        %v371 = vadd.f32 0.0, %v370
        %v372 = vpop.f32.mrf.mxu0
        %373 = vmatprep.mubr.f32.mxu0 0.0
        %374 = vmatmul.mubr.f32.gmra.mxu0 %v261
        %v375 = vpop.f32.mrf.mxu0
        %v376 = vadd.f32 0.0, %v375
        %v377 = vpop.f32.mrf.mxu0
        %378 = vmatprep.mubr.f32.mxu0 0.0
        %379 = vmatmul.mubr.f32.gmra.mxu0 %v262
        %v380 = vpop.f32.mrf.mxu0
        %v381 = vadd.f32 0.0, %v380
        %v382 = vpop.f32.mrf.mxu0
        %383 = vmatprep.mubr.f32.mxu0 0.0
        %384 = vmatmul.mubr.f32.gmra.mxu0 %v263
        %v385 = vpop.f32.mrf.mxu0
        %v386 = vadd.f32 0.0, %v385
        %v387 = vpop.f32.mrf.mxu0
        %388 = vmatprep.mubr.f32.mxu0 0.0
        %389 = vmatmul.mubr.f32.gmra.mxu0 %v264
        %v390 = vpop.f32.mrf.mxu0
        %v391 = vadd.f32 0.0, %v390
        %v392 = vpop.f32.mrf.mxu0
        %393 = vmatprep.mubr.f32.mxu0 0.0
        %394 = vmatmul.mubr.f32.gmra.mxu0 %v265
        %v395 = vpop.f32.mrf.mxu0
        %v396 = vadd.f32 0.0, %v395
        %v397 = vpop.f32.mrf.mxu0
        %398 = vmatprep.mubr.f32.mxu0 0.0
        %399 = vmatmul.mubr.f32.gmra.mxu0 %v266
        %v400 = vpop.f32.mrf.mxu0
        %v401 = vadd.f32 0.0, %v400
        %v402 = vpop.f32.mrf.mxu0
        %403 = vmatprep.mubr.f32.mxu0 0.0
        %404 = vmatmul.mubr.f32.gmra.mxu0 %v267
        %v405 = vpop.f32.mrf.mxu0
        %v406 = vadd.f32 0.0, %v405
        %v407 = vpop.f32.mrf.mxu0
        %408 = vmatprep.mubr.f32.mxu0 0.0
        %409 = vmatmul.mubr.f32.gmra.mxu0 %v268
        %v410 = vpop.f32.mrf.mxu0
        %v411 = vadd.f32 0.0, %v410
        %v412 = vpop.f32.mrf.mxu0
        %413 = vmatprep.mubr.f32.mxu0 0.0
        %414 = vmatmul.mubr.f32.gmra.mxu0 %v269
        %v415 = vpop.f32.mrf.mxu0
        %v416 = vadd.f32 0.0, %v415
        %v417 = vpop.f32.mrf.mxu0
        %418 = vmatprep.mubr.f32.mxu0 0.0
        %419 = vmatmul.mubr.f32.gmra.mxu0 %v270
        %v420 = vpop.f32.mrf.mxu0
        %v421 = vadd.f32 0.0, %v420
        %v422 = vpop.f32.mrf.mxu0
        %423 = vmatprep.mubr.f32.mxu0 0.0
        %424 = vmatmul.mubr.f32.gmra.mxu0 %v271
        %v425 = vpop.f32.mrf.mxu0
        %v426 = vadd.f32 0.0, %v425
        %v427 = vpop.f32.mrf.mxu0
        %428 = vmatprep.mubr.f32.mxu0 0.0
        %429 = vmatmul.mubr.f32.gmra.mxu0 %v272
        %v430 = vpop.f32.mrf.mxu0
        %v431 = vadd.f32 0.0, %v430
        %v432 = vpop.f32.mrf.mxu0
        %433 = vdwg.mxu0
        %v434 = vadd.f32 %v241, %v356
        %v435 = vadd.f32 %v242, %v361
        %v436 = vadd.f32 %v243, %v366
        %v437 = vadd.f32 %v244, %v371
        %v438 = vadd.f32 %v245, %v376
        %v439 = vadd.f32 %v246, %v381
        %v440 = vadd.f32 %v247, %v386
        %v441 = vadd.f32 %v248, %v391
        %v442 = vadd.f32 %v249, %v396
        %v443 = vadd.f32 %v250, %v401
        %v444 = vadd.f32 %v251, %v406
        %v445 = vadd.f32 %v252, %v411
        %v446 = vadd.f32 %v253, %v416
        %v447 = vadd.f32 %v254, %v421
        %v448 = vadd.f32 %v255, %v426
        %v449 = vadd.f32 %v256, %v431
        %450 = vst [vmem:[#allocation2] sm:$0xff] %v434
        %451 = vst [vmem:[#allocation2 + $0x8] sm:$0xff] %v435
        %452 = vst [vmem:[#allocation2 + $0x10] sm:$0xff] %v436
        %453 = vst [vmem:[#allocation2 + $0x18] sm:$0xff] %v437
        %454 = vst [vmem:[#allocation2 + $0x20] sm:$0xff] %v438
        %455 = vst [vmem:[#allocation2 + $0x28] sm:$0xff] %v439
        %456 = vst [vmem:[#allocation2 + $0x30] sm:$0xff] %v440
        %457 = vst [vmem:[#allocation2 + $0x38] sm:$0xff] %v441
        %458 = vst [vmem:[#allocation2 + $0x40] sm:$0xff] %v442
        %459 = vst [vmem:[#allocation2 + $0x48] sm:$0xff] %v443
        %460 = vst [vmem:[#allocation2 + $0x50] sm:$0xff] %v444
        %461 = vst [vmem:[#allocation2 + $0x58] sm:$0xff] %v445
        %462 = vst [vmem:[#allocation2 + $0x60] sm:$0xff] %v446
        %463 = vst [vmem:[#allocation2 + $0x68] sm:$0xff] %v447
        %464 = vst [vmem:[#allocation2 + $0x70] sm:$0xff] %v448
        %465 = vst [vmem:[#allocation2 + $0x78] sm:$0xff] %v449
        %p466 = scmp.eq.s32.totalorder %s27, 2
        // Predicated region
        $region41: #{tpu_custom_call.1} parent=27 // pred_check
          %p467 = pneg %p466
        $region42: #{tpu_custom_call.1} parent=27 // pred_check_branch
          %469 = sbr.rel (%p467) target = $region44
        $region43: #{tpu_custom_call.1} parent=27 // pred_region
          %v470 = vld [vmem:[#allocation2] sm:$0xff]
          %v471 = vld [vmem:[#allocation2 + $0x8] sm:$0xff]
          %v472 = vld [vmem:[#allocation2 + $0x10] sm:$0xff]
          %v473 = vld [vmem:[#allocation2 + $0x18] sm:$0xff]
          %v474 = vld [vmem:[#allocation2 + $0x20] sm:$0xff]
          %v475 = vld [vmem:[#allocation2 + $0x28] sm:$0xff]
          %v476 = vld [vmem:[#allocation2 + $0x30] sm:$0xff]
          %v477 = vld [vmem:[#allocation2 + $0x38] sm:$0xff]
          %v478 = vld [vmem:[#allocation2 + $0x40] sm:$0xff]
          %v479 = vld [vmem:[#allocation2 + $0x48] sm:$0xff]
          %v480 = vld [vmem:[#allocation2 + $0x50] sm:$0xff]
          %v481 = vld [vmem:[#allocation2 + $0x58] sm:$0xff]
          %v482 = vld [vmem:[#allocation2 + $0x60] sm:$0xff]
          %v483 = vld [vmem:[#allocation2 + $0x68] sm:$0xff]
          %v484 = vld [vmem:[#allocation2 + $0x70] sm:$0xff]
          %v485 = vld [vmem:[#allocation2 + $0x78] sm:$0xff]
          %v486 = vmul.f32 %v470, %v470
          %v487 = vmul.f32 %v471, %v471
          %v488 = vmul.f32 %v472, %v472
          %v489 = vmul.f32 %v473, %v473
          %v490 = vmul.f32 %v474, %v474
          %v491 = vmul.f32 %v475, %v475
          %v492 = vmul.f32 %v476, %v476
          %v493 = vmul.f32 %v477, %v477
          %v494 = vmul.f32 %v478, %v478
          %v495 = vmul.f32 %v479, %v479
          %v496 = vmul.f32 %v480, %v480
          %v497 = vmul.f32 %v481, %v481
          %v498 = vmul.f32 %v482, %v482
          %v499 = vmul.f32 %v483, %v483
          %v500 = vmul.f32 %v484, %v484
          %v501 = vmul.f32 %v485, %v485
          %502 = vadd.xlane.f32.xlu0 %v486
          %v503 = vpop.xlane.xlu0 %502
          %504 = vadd.xlane.f32.xlu0 %v487
          %v505 = vpop.xlane.xlu0 %504
          %506 = vadd.xlane.f32.xlu0 %v488
          %v507 = vpop.xlane.xlu0 %506
          %508 = vadd.xlane.f32.xlu0 %v489
          %v509 = vpop.xlane.xlu0 %508
          %510 = vadd.xlane.f32.xlu0 %v490
          %v511 = vpop.xlane.xlu0 %510
          %512 = vadd.xlane.f32.xlu0 %v491
          %v513 = vpop.xlane.xlu0 %512
          %514 = vadd.xlane.f32.xlu0 %v492
          %v515 = vpop.xlane.xlu0 %514
          %516 = vadd.xlane.f32.xlu0 %v493
          %v517 = vpop.xlane.xlu0 %516
          %518 = vadd.xlane.f32.xlu0 %v494
          %v519 = vpop.xlane.xlu0 %518
          %520 = vadd.xlane.f32.xlu0 %v495
          %v521 = vpop.xlane.xlu0 %520
          %522 = vadd.xlane.f32.xlu0 %v496
          %v523 = vpop.xlane.xlu0 %522
          %524 = vadd.xlane.f32.xlu0 %v497
          %v525 = vpop.xlane.xlu0 %524
          %526 = vadd.xlane.f32.xlu0 %v498
          %v527 = vpop.xlane.xlu0 %526
          %528 = vadd.xlane.f32.xlu0 %v499
          %v529 = vpop.xlane.xlu0 %528
          %530 = vadd.xlane.f32.xlu0 %v500
          %v531 = vpop.xlane.xlu0 %530
          %532 = vadd.xlane.f32.xlu0 %v501
          %v533 = vpop.xlane.xlu0 %532
          %v534 = vmul.f32 %v486, 2.0
          %v535 = vmul.f32 %v487, 2.0
          %v536 = vmul.f32 %v488, 2.0
          %v537 = vmul.f32 %v489, 2.0
          %v538 = vmul.f32 %v490, 2.0
          %v539 = vmul.f32 %v491, 2.0
          %v540 = vmul.f32 %v492, 2.0
          %v541 = vmul.f32 %v493, 2.0
          %v542 = vmul.f32 %v494, 2.0
          %v543 = vmul.f32 %v495, 2.0
          %v544 = vmul.f32 %v496, 2.0
          %v545 = vmul.f32 %v497, 2.0
          %v546 = vmul.f32 %v498, 2.0
          %v547 = vmul.f32 %v499, 2.0
          %v548 = vmul.f32 %v500, 2.0
          %v549 = vmul.f32 %v501, 2.0
          %v550 = vsub.f32 %v503, %v534
          %v551 = vsub.f32 %v505, %v535
          %v552 = vsub.f32 %v507, %v536
          %v553 = vsub.f32 %v509, %v537
          %v554 = vsub.f32 %v511, %v538
          %v555 = vsub.f32 %v513, %v539
          %v556 = vsub.f32 %v515, %v540
          %v557 = vsub.f32 %v517, %v541
          %v558 = vsub.f32 %v519, %v542
          %v559 = vsub.f32 %v521, %v543
          %v560 = vsub.f32 %v523, %v544
          %v561 = vsub.f32 %v525, %v545
          %v562 = vsub.f32 %v527, %v546
          %v563 = vsub.f32 %v529, %v547
          %v564 = vsub.f32 %v531, %v548
          %v565 = vsub.f32 %v533, %v549
          %v566 = vand.u32 2147483647, %v550
          %v567 = vand.u32 2147483647, %v551
          %v568 = vand.u32 2147483647, %v552
          %v569 = vand.u32 2147483647, %v553
          %v570 = vand.u32 2147483647, %v554
          %v571 = vand.u32 2147483647, %v555
          %v572 = vand.u32 2147483647, %v556
          %v573 = vand.u32 2147483647, %v557
          %v574 = vand.u32 2147483647, %v558
          %v575 = vand.u32 2147483647, %v559
          %v576 = vand.u32 2147483647, %v560
          %v577 = vand.u32 2147483647, %v561
          %v578 = vand.u32 2147483647, %v562
          %v579 = vand.u32 2147483647, %v563
          %v580 = vand.u32 2147483647, %v564
          %v581 = vand.u32 2147483647, %v565
          %v582 = vmax.f32 %v566, 1e-30
          %v583 = vmax.f32 %v567, 1e-30
          %v584 = vmax.f32 %v568, 1e-30
          %v585 = vmax.f32 %v569, 1e-30
          %v586 = vmax.f32 %v570, 1e-30
          %v587 = vmax.f32 %v571, 1e-30
          %v588 = vmax.f32 %v572, 1e-30
          %v589 = vmax.f32 %v573, 1e-30
          %v590 = vmax.f32 %v574, 1e-30
          %v591 = vmax.f32 %v575, 1e-30
          %v592 = vmax.f32 %v576, 1e-30
          %v593 = vmax.f32 %v577, 1e-30
          %v594 = vmax.f32 %v578, 1e-30
          %v595 = vmax.f32 %v579, 1e-30
          %v596 = vmax.f32 %v580, 1e-30
          %v597 = vmax.f32 %v581, 1e-30
          %v598 = vrsqrt.pop %v582
          %v599 = vrsqrt.pop %v583
          %v600 = vrsqrt.pop %v584
          %v601 = vrsqrt.pop %v585
          %v602 = vrsqrt.pop %v586
          %v603 = vrsqrt.pop %v587
          %v604 = vrsqrt.pop %v588
          %v605 = vrsqrt.pop %v589
          %v606 = vrsqrt.pop %v590
          %v607 = vrsqrt.pop %v591
          %v608 = vrsqrt.pop %v592
          %v609 = vrsqrt.pop %v593
          %v610 = vrsqrt.pop %v594
          %v611 = vrsqrt.pop %v595
          %v612 = vrsqrt.pop %v596
          %v613 = vrsqrt.pop %v597
          %615 = vset.pattern.permute.xlu0 0
          %616 = vperm.xlu0 %615, %v598
          %v617 = vpop.permute.xlu0 %616
          %620 = vset.pattern.permute.xlu0 0
          %621 = vperm.xlu0 %620, %v599
          %v622 = vpop.permute.xlu0 %621
          %625 = vset.pattern.permute.xlu0 0
          %626 = vperm.xlu0 %625, %v600
          %v627 = vpop.permute.xlu0 %626
          %630 = vset.pattern.permute.xlu0 0
          %631 = vperm.xlu0 %630, %v601
          %v632 = vpop.permute.xlu0 %631
          %635 = vset.pattern.permute.xlu0 0
          %636 = vperm.xlu0 %635, %v602
          %v637 = vpop.permute.xlu0 %636
          %640 = vset.pattern.permute.xlu0 0
          %641 = vperm.xlu0 %640, %v603
          %v642 = vpop.permute.xlu0 %641
          %645 = vset.pattern.permute.xlu0 0
          %646 = vperm.xlu0 %645, %v604
          %v647 = vpop.permute.xlu0 %646
          %650 = vset.pattern.permute.xlu0 0
          %651 = vperm.xlu0 %650, %v605
          %v652 = vpop.permute.xlu0 %651
          %655 = vset.pattern.permute.xlu0 0
          %656 = vperm.xlu0 %655, %v606
          %v657 = vpop.permute.xlu0 %656
          %660 = vset.pattern.permute.xlu0 0
          %661 = vperm.xlu0 %660, %v607
          %v662 = vpop.permute.xlu0 %661
          %665 = vset.pattern.permute.xlu0 0
          %666 = vperm.xlu0 %665, %v608
          %v667 = vpop.permute.xlu0 %666
          %670 = vset.pattern.permute.xlu0 0
          %671 = vperm.xlu0 %670, %v609
          %v672 = vpop.permute.xlu0 %671
          %675 = vset.pattern.permute.xlu0 0
          %676 = vperm.xlu0 %675, %v610
          %v677 = vpop.permute.xlu0 %676
          %680 = vset.pattern.permute.xlu0 0
          %681 = vperm.xlu0 %680, %v611
          %v682 = vpop.permute.xlu0 %681
          %685 = vset.pattern.permute.xlu0 0
          %686 = vperm.xlu0 %685, %v612
          %v687 = vpop.permute.xlu0 %686
          %690 = vset.pattern.permute.xlu0 0
          %691 = vperm.xlu0 %690, %v613
          %v692 = vpop.permute.xlu0 %691
          %v694 = vmul.f32 %v617, %v470
          %v695 = vmul.f32 %v622, %v471
          %v696 = vmul.f32 %v627, %v472
          %v697 = vmul.f32 %v632, %v473
          %v698 = vmul.f32 %v637, %v474
          %v699 = vmul.f32 %v642, %v475
          %v700 = vmul.f32 %v647, %v476
          %v701 = vmul.f32 %v652, %v477
          %v702 = vmul.f32 %v657, %v478
          %v703 = vmul.f32 %v662, %v479
          %v704 = vmul.f32 %v667, %v480
          %v705 = vmul.f32 %v672, %v481
          %v706 = vmul.f32 %v677, %v482
          %v707 = vmul.f32 %v682, %v483
          %v708 = vmul.f32 %v687, %v484
          %v709 = vmul.f32 %v692, %v485
          %710 = vst [vmem:[%s217] sm:$0xff] %v694
          %711 = vst [vmem:[%s217 + $0x8] sm:$0xff] %v695
          %712 = vst [vmem:[%s217 + $0x10] sm:$0xff] %v696
          %713 = vst [vmem:[%s217 + $0x18] sm:$0xff] %v697
          %714 = vst [vmem:[%s217 + $0x20] sm:$0xff] %v698
          %715 = vst [vmem:[%s217 + $0x28] sm:$0xff] %v699
          %716 = vst [vmem:[%s217 + $0x30] sm:$0xff] %v700
          %717 = vst [vmem:[%s217 + $0x38] sm:$0xff] %v701
          %718 = vst [vmem:[%s217 + $0x40] sm:$0xff] %v702
          %719 = vst [vmem:[%s217 + $0x48] sm:$0xff] %v703
          %720 = vst [vmem:[%s217 + $0x50] sm:$0xff] %v704
          %721 = vst [vmem:[%s217 + $0x58] sm:$0xff] %v705
          %722 = vst [vmem:[%s217 + $0x60] sm:$0xff] %v706
          %723 = vst [vmem:[%s217 + $0x68] sm:$0xff] %v707
          %724 = vst [vmem:[%s217 + $0x70] sm:$0xff] %v708
          %725 = vst [vmem:[%s217 + $0x78] sm:$0xff] %v709
        $region44: #{tpu_custom_call.1} parent=27 // pred_fallthru
          _
        %s726 = sand.u32 %s96, 1
        %s727 = scalar_lea.sflag [#allocation5], %s726
        %s728 = sand.u32 %s96, 1
        %s729 = smul.addr %s728, 128
        %s730 = scalar_lea.vmem [#allocation8], %s729
        // Predicated region
        $region45: #{tpu_custom_call.1} parent=27 // pred_check
          %p731 = pneg %p106
        $region46: #{tpu_custom_call.1} parent=27 // pred_check_branch
          %733 = sbr.rel (%p731) target = $region48
        $region47: #{tpu_custom_call.1} parent=27 // pred_region
          %s734 = smul.u32 16, %s26
          %s736 = ssub.s32 2048, 2048
          %737 = vsyncadd %s727, %s736
          %s738 = smul.addr %s734, 128
          %s739 = scalar_lea.hbm %s2, %s738
          %s740 = sshll.u32 %s730, 4
          %s741 = int_to_ptr.vmem [resolvable:$true] %s740
          %746 = dma.vmem_to_hbm [thread:$0]  %s741, 2048, %s739, %s727, 128, 128, 8
        $region48: #{tpu_custom_call.1} parent=27 // pred_fallthru
          _
      $region28: #{tpu_custom_call.1} parent=5 // pred_fallthru
        _
      %p747 = scmp.le.s32.totalorder 2, %s17
      // Predicated region
      $region49: #{tpu_custom_call.1} parent=5 // pred_check
        %p748 = pneg %p747
      $region50: #{tpu_custom_call.1} parent=5 // pred_check_branch
        %750 = sbr.rel (%p748) target = $region52
      $region51: #{tpu_custom_call.1} parent=5 // pred_region
        %s751 = ssub.s32 %s17, 2
        // Predicated region
        $region53: #{tpu_custom_call.1} parent=51 // pred_check
          %p752 = pneg %p112
        $region54: #{tpu_custom_call.1} parent=51 // pred_check_branch
          %754 = sbr.rel (%p752) target = $region56
        $region55: #{tpu_custom_call.1} parent=51 // pred_region
          %s755 = sand.u32 %s97, 1
          %s756 = scalar_lea.sflag [#allocation5], %s755
          %s757 = sand.u32 %s97, 1
          %s758 = smul.addr %s757, 128
          %s759 = scalar_lea.vmem [#allocation8], %s758
          %760 = dma.done %s756, 2048
        $region56: #{tpu_custom_call.1} parent=51 // pred_fallthru
          _
      $region52: #{tpu_custom_call.1} parent=5 // pred_fallthru
        _
    $region6: #{tpu_custom_call.1} parent=1 // loop_footer
      %s21 = sadd.s32 1, %s17
    $region7: #{tpu_custom_call.1} parent=1 // loop_footer_branch
      %16 = sbr.rel target = $region3
    $region8: #{tpu_custom_call.1} parent=1 // loop_exit
      _
    %761 = vsyncpa [#allocation4], 1
    %s762 = scalar_lea.sflag [#allocation4], 1
    %763 = vsyncpa %s762, 1
    %764 = vsyncpa [#allocation7], 1
    %s765 = scalar_lea.sflag [#allocation7], 1
    %766 = vsyncpa %s765, 1
    %767 = vsyncpa [#allocation5], 1
    %s768 = scalar_lea.sflag [#allocation5], 1
    %769 = vsyncpa %s768, 1

</llo_original>
